<compile_context>
chip_gen: v7x
topology: tpu7x:2x2x1
jax: 0.10.0
libtpu: 0.0.40
codegen_flags: <defaults>
</compile_context>

<pallas_src>
import functools

import jax
import jax.numpy as jnp
import numpy as np
from jax.experimental import pallas as pl
from jax.experimental.pallas import tpu as pltpu


# ----------------------------------------------------------------------------
# Pallas kernel: global pool over the time axis (axis 1) of a (Bblk, L, C) tile
# ----------------------------------------------------------------------------
def _pool_kernel(x_ref, o_ref, *, pooling):
    # x_ref: (Bblk, L, C)   o_ref: (Bblk, C)
    x = x_ref[...]
    if pooling == "max":
        red = jnp.max(x, axis=1)                              # AdaptiveMaxPool1d(1)
    else:  # "average"
        xf = x if x.dtype == jnp.float32 else x.astype(jnp.float32)
        red = jnp.mean(xf, axis=1)                            # AdaptiveAvgPool1d(1)
    o_ref[...] = red.astype(o_ref.dtype)


def pooling_encoder_forward(x, pooling="max", *, block_b=None):
    """PoolingEncoder.forward.  x: (B, L, C) -> torch.squeeze(pool) semantics."""
    assert pooling in ("max", "average"), pooling
    B, L, C = x.shape

    # Single fused invocation: whole batch in one block.  For huge B, pass a
    # block_b (multiple of 8, dividing B) to tile the batch dim across the grid.
    if block_b is None or block_b >= B:
        block_b = B
    else:
        assert block_b % 8 == 0 and B % block_b == 0, (B, block_b)
    grid = (pl.cdiv(B, block_b),)

    kernel = functools.partial(_pool_kernel, pooling=pooling)
    out = pl.pallas_call(
        kernel,
        out_shape=jax.ShapeDtypeStruct((B, C), x.dtype),
        grid=grid,
        in_specs=[pl.BlockSpec((block_b, L, C), lambda i: (i, 0, 0))],
        out_specs=pl.BlockSpec((block_b, C), lambda i: (i, 0)),
        compiler_params=pltpu.CompilerParams(
            dimension_semantics=("parallel",)),
    )(x)

    # torch.squeeze() removes every size-1 dim (e.g. B==1 -> (C,)); replicate
    # that exactly here (the pooled length-1 dim never materializes at all).
    return jnp.squeeze(out)


# ----------------------------------------------------------------------------
# Pure-JAX reference (mirrors the PyTorch module op-for-op)
# ----------------------------------------------------------------------------
def ref_forward(x, pooling="max"):
    xt = jnp.transpose(x, (0, 2, 1))                          # (B, C, L)
    if pooling == "max":
        p = jnp.max(xt, axis=2, keepdims=True)                # (B, C, 1)
    else:
        p = jnp.mean(xt.astype(jnp.float32), axis=2, keepdims=True).astype(x.dtype)
    return jnp.squeeze(p)                                     # torch.squeeze


if __name__ == "__main__":
    # Small shapes consistent with the module: batch=2, seq=16, hidden=32.
    B, L, C = 2, 16, 32
    key = jax.random.PRNGKey(0)
    x = jax.random.normal(key, (B, L, C), dtype=jnp.float32)

    # pooling='max' path (primary)
    out = jax.block_until_ready(pooling_encoder_forward(x, pooling="max"))
    ref = ref_forward(x, pooling="max")
    assert out.shape == (B, C), out.shape
    np.testing.assert_allclose(np.asarray(out), np.asarray(ref),
                               rtol=1e-6, atol=1e-6)

    # pooling='average' path
    out_avg = jax.block_until_ready(pooling_encoder_forward(x, pooling="average"))
    ref_avg = ref_forward(x, pooling="average")
    assert out_avg.shape == (B, C), out_avg.shape
    np.testing.assert_allclose(np.asarray(out_avg), np.asarray(ref_avg),
                               rtol=1e-5, atol=1e-5)

    # B == 1 squeeze semantics (torch.squeeze drops the batch dim too)
    x1 = jax.random.normal(jax.random.PRNGKey(0), (1, L, C), dtype=jnp.float32)
    out1 = jax.block_until_ready(pooling_encoder_forward(x1, pooling="max"))
    assert out1.shape == (C,), out1.shape
    np.testing.assert_allclose(np.asarray(out1), np.asarray(ref_forward(x1, "max")),
                               rtol=1e-6, atol=1e-6)

    print("KERNEL_OK")
</pallas_src>

<mosaic_0001>
module attributes {stable_mosaic.version = 11 : i64} {
  func.func @_pool_kernel(%arg0: i32, %arg1: memref<2x16x32xf32, #tpu.memory_space<vmem>>, %arg2: memref<2x32xf32, #tpu.memory_space<vmem>>) attributes {dimension_semantics = [#tpu.dimension_semantics<parallel>], iteration_bounds = array<i64: 1>, scalar_prefetch = 0 : i64, scratch_operands = 0 : i64, tpu.core_type = #tpu.core_type<tc>, window_params = [{transform_indices = @transform_0, window_bounds = array<i64: 2, 16, 32>}, {transform_indices = @transform_1, window_bounds = array<i64: 2, 32>}]} {
    %c0 = arith.constant 0 : index
    %c0_0 = arith.constant 0 : index
    %c0_1 = arith.constant 0 : index
    %0 = vector.load %arg1[%c0, %c0_0, %c0_1] : memref<2x16x32xf32, #tpu.memory_space<vmem>>, vector<2x16x32xf32>
    %cst = arith.constant dense<0xFF800000> : vector<2x32xf32>
    %1 = vector.multi_reduction <maximumf>, %0, %cst [1] : vector<2x16x32xf32> to vector<2x32xf32>
    %c0_2 = arith.constant 0 : index
    %c0_3 = arith.constant 0 : index
    %2 = vector.load %arg2[%c0_2, %c0_3] : memref<2x32xf32, #tpu.memory_space<vmem>>, vector<2x32xf32>
    tpu.vector_store %arg2[%c0_2, %c0_3], %1 {strides = array<i32>} : memref<2x32xf32, #tpu.memory_space<vmem>>, vector<2x32xf32>,
    return
  }
  func.func @transform_0(%arg0: i32) -> (i32, i32, i32) {
    %c0_i32 = arith.constant 0 : i32
    %c0_i32_0 = arith.constant 0 : i32
    %c0_i32_1 = arith.constant 0 : i32
    return %arg0, %c0_i32, %c0_i32_0 : i32, i32, i32
  }
  func.func @transform_1(%arg0: i32) -> (i32, i32) {
    %c0_i32 = arith.constant 0 : i32
    %c0_i32_0 = arith.constant 0 : i32
    return %arg0, %c0_i32 : i32, i32
  }
}

</mosaic_0001>

<llo_original>
// kernel: tpu_custom_call.1
$region0: #{tpu_custom_call.1}
  #allocation0 [shape = 'u32[]', space=smem, size = 0x4, offset = 0x4, fixed_abs, tag = 'smem constant byte address 0x4 - core index']
  #allocation1 [shape = 'u32[144,128]{1,0:T(1,128)}', space=vmem, size = 0x12000, scoped, tag = 'internal scratch']
  %s0 = inlined_call_operand.hbm [shape: f32[2,16,32], index: 0, kind: input, shape index: {}]
  %s1 = inlined_call_operand.hbm [shape: f32[2,32], index: 1, kind: output, shape index: {}]
  %s2 = sld [smem:[#allocation0]]
  $region18: #{tpu_custom_call.1} parent=0
    _
  %s4 = ssub.s32 1, %s2
  %s5 = scalar_select 0, %s4, %s2
  $region1: #{tpu_custom_call.1} parent=0
    #allocation2 [shape = 'u8[16384]{0}', space=vmem, size = 0x4000, scoped, tag = 'input window, operand 0, single buffered']
    #allocation3 [shape = 's32[1]{0}', space=sflag, size = 0x4, scoped, tag = 'scoped memory for tpu_custom_call.1']
    #allocation4 [shape = 's32[1]{0}', space=sflag, size = 0x4, scoped, tag = 'scoped memory for tpu_custom_call.1']
    #allocation5 [shape = 'u8[1024]{0}', space=vmem, size = 0x400, scoped, tag = 'output window, operand 0, single buffered']
    %6 = vsyncpa [#allocation3], 0
    %7 = vsyncpa [#allocation4], 0
    // Predicated region
    $region2: #{tpu_custom_call.1} parent=1 // pred_check
      _
    $region3: #{tpu_custom_call.1} parent=1 // pred_check_branch
      %9 = sbr.rel (0) target = $region5
    $region4: #{tpu_custom_call.1} parent=1 // pred_region
      %s11 = ssub.s32 512, 512
      %12 = vsyncadd [#allocation3], %s11
      %s13 = sshll.u32 [#allocation2], 4
      %s14 = int_to_ptr.vmem [resolvable:$true] %s13
      %19 = dma.hbm_to_vmem [thread:$0]  %s0, 512, %s14, [#allocation3], 128, 128, 8
    $region5: #{tpu_custom_call.1} parent=1 // pred_fallthru
      _
    // Predicated region
    $region6: #{tpu_custom_call.1} parent=1 // pred_check
      _
    $region7: #{tpu_custom_call.1} parent=1 // pred_check_branch
      %21 = sbr.rel (0) target = $region9
    $region8: #{tpu_custom_call.1} parent=1 // pred_region
      %22 = dma.done [#allocation3], 512
    $region9: #{tpu_custom_call.1} parent=1 // pred_fallthru
      _
    %v23 = vld [vmem:[#allocation2] sm:$0xff]
    %v24 = vld [vmem:[#allocation2 + $0x8] sm:$0xff]
    %v25 = vld [vmem:[#allocation2 + $0x10] sm:$0xff]
    %v26 = vld [vmem:[#allocation2 + $0x18] sm:$0xff]
    %vm27 = vcmask 261120
    %v28 = vsel %vm27, %v23, -inf
    %v29 = vsel %vm27, %v24, -inf
    %v30 = vmax.f32 %v28, %v29
    %v31 = vrot.slane %v30, 4
    %v32 = vmax.f32 %v30, %v31
    %v33 = vrot.slane %v32, 2
    %v34 = vmax.f32 %v32, %v33
    %v35 = vrot.slane %v34, 1
    %v36 = vmax.f32 %v34, %v35
    %v37 = vsel %vm27, %v25, -inf
    %v38 = vsel %vm27, %v26, -inf
    %v39 = vmax.f32 %v37, %v38
    %v40 = vrot.slane %v39, 4
    %v41 = vmax.f32 %v39, %v40
    %v42 = vrot.slane %v41, 2
    %v43 = vmax.f32 %v41, %v42
    %v44 = vrot.slane %v43, 1
    %v45 = vmax.f32 %v43, %v44
    %vm48 = vcmask 1041409
    %v49 = vsel %vm48, %v45, %v36
    %vm51 = vcmask 254976
    %52 = vst.msk [vmem:[#allocation5] sm:$0x3] %vm51, %v49
    // Predicated region
    $region10: #{tpu_custom_call.1} parent=1 // pred_check
      _
    $region11: #{tpu_custom_call.1} parent=1 // pred_check_branch
      %54 = sbr.rel (0) target = $region13
    $region12: #{tpu_custom_call.1} parent=1 // pred_region
      %s56 = ssub.s32 32, 32
      %57 = vsyncadd [#allocation4], %s56
      %s59 = sshll.u32 [#allocation5], 4
      %s60 = int_to_ptr.vmem [resolvable:$true] %s59
      %62 = dma.vmem_to_hbm [thread:$0]  %s60, 32, %s1, [#allocation4]
    $region13: #{tpu_custom_call.1} parent=1 // pred_fallthru
      _
    // Predicated region
    $region14: #{tpu_custom_call.1} parent=1 // pred_check
      _
    $region15: #{tpu_custom_call.1} parent=1 // pred_check_branch
      %64 = sbr.rel (0) target = $region17
    $region16: #{tpu_custom_call.1} parent=1 // pred_region
      %65 = dma.done [#allocation4], 32
    $region17: #{tpu_custom_call.1} parent=1 // pred_fallthru
      _
    %66 = vsyncpa [#allocation3], 1
    %67 = vsyncpa [#allocation4], 1

</llo_original>
